<compile_context>
chip_gen: v6e
topology: v6e:2x2x1
jax: 0.10.0
libtpu: 0.0.40
codegen_flags: <defaults>
</compile_context>

<pallas_src>
import functools

import jax
import jax.numpy as jnp
from jax.experimental import pallas as pl
from jax.experimental.pallas import tpu as pltpu


def _round_up(x, m):
    return ((x + m - 1) // m) * m


def _cdiv(a, b):
    return -(-a // b)


@functools.lru_cache(maxsize=None)
def _tpu_budget():
    """Per-generation (tile ceiling in sublane rows, vmem_limit_bytes)."""
    vmem_bytes = 64 << 20                      # conservative default: v7x
    try:
        info = pltpu.get_tpu_info()
        vmem_bytes = int(getattr(info, "vmem_capacity_bytes", vmem_bytes))
    except Exception:
        pass
    if vmem_bytes >= (96 << 20):
        # v5e / v6e: 128 MiB physical VMEM -> 8 MiB f32 blocks,
        # 2 inputs x 2 buffers = 32 MiB, comfortably under an 80 MiB limit.
        return 16384, 80 << 20
    # v7x: 64 MiB physical VMEM, 3.2 TB/s HBM -> 4 MiB blocks (16 MiB
    # double-buffered) amortize the ~0.35 us/step overhead, 48 MiB limit.
    return 8192, 48 << 20


def _choose_tiling(n_sub, ts_max):
    """Balanced split of n_sub (>= 8) sublane rows into n_tiles tiles."""
    n_tiles = _cdiv(n_sub, ts_max)
    ts_sub = _round_up(_cdiv(n_sub, n_tiles), 8)
    ts_sub = min(ts_sub, (n_sub // 8) * 8)     # keep block <= array extent
    n_tiles = _cdiv(n_sub, ts_sub)
    return ts_sub, n_tiles


def _fold_to_8x128(loss2d, ts_sub):
    """(ts_sub, 128) -> (8, 128) with plain vreg adds (VALU only).

    ts_sub is always a multiple of 8; the reshape splits the sublane axis into
    native (8, 128) groups, so this stays in-register / streams (no cross-lane
    XLU work).  The single cross-lane reduction happens outside the kernel on
    the tiny (R, 8, 128) output.
    """
    if ts_sub == 8:
        return loss2d
    return loss2d.reshape(ts_sub // 8, 8, 128).sum(axis=0)


def _bce_tile_kernel(p_ref, t_ref, o_ref, *, ts_sub, s_valid, n_sub_valid,
                     lane_ragged, needs_mask):
    """Grid = (row, spatial_tile); o_ref is a resident (8, 128) accumulator."""
    j = pl.program_id(1)

    @pl.when(j == 0)
    def _init():
        o_ref[...] = jnp.zeros_like(o_ref)

    def tile_loss():
        # Cast from the native storage dtype (f32/bf16/int8 targets all work)
        # to f32 inside the kernel; keep all math in f32 (v5e has no bf16 VPU/EUP).
        x = p_ref[...].astype(jnp.float32)      # (ts_sub, 128)
        y = t_ref[...].astype(jnp.float32)
        # nn.BCEWithLogitsLoss(reduction='none'), numerically stable form:
        #   max(x, 0) - x*y + log1p(exp(-|x|))
        return jnp.maximum(x, 0.0) - x * y + jnp.log1p(jnp.exp(-jnp.abs(x)))

    if not needs_mask:
        o_ref[...] += _fold_to_8x128(tile_loss(), ts_sub)
    else:
        last = pl.num_programs(1) - 1

        # Hot tiles: pure elementwise math + fold, no mask overhead.
        @pl.when(j != last)
        def _hot():
            o_ref[...] += _fold_to_8x128(tile_loss(), ts_sub)

        # Only the last tile pays for the tail mask (covers both lane padding
        # and sublane rows that fall past the end of the array / garbage from
        # the partial boundary block).
        @pl.when(j == last)
        def _tail():
            loss = tile_loss()
            sub = jax.lax.broadcasted_iota(jnp.int32, (ts_sub, 128), 0)
            row = j * ts_sub + sub
            if lane_ragged:
                lane = jax.lax.broadcasted_iota(jnp.int32, (ts_sub, 128), 1)
                keep = row * 128 + lane < s_valid
            else:
                keep = row < n_sub_valid
            o_ref[...] += _fold_to_8x128(jnp.where(keep, loss, 0.0), ts_sub)


def bce_partial_sums(p2, t2, S):
    """Per-row lane-dense partial sums of BCE-with-logits.

    Inputs: (R, S) arrays in their native storage dtype (cast to f32 in-kernel,
    so narrow target dtypes cut HBM traffic for free).
    Output: (R, 8, 128) f32; summing the last two dims gives each row's loss sum.
    """
    R = p2.shape[0]
    assert S < 2 ** 31, "int32 tail-mask index math requires S < 2**31"

    n_sub_valid = _cdiv(S, 128)                 # 128-lane rows actually holding data
    n_sub = max(8, n_sub_valid)                 # storage rows (tiny volumes pad to 8)
    lane_ragged = (S % 128) != 0
    pad_elems = n_sub * 128 - S if (lane_ragged or n_sub_valid < 8) else 0

    ts_max, vmem_limit = _tpu_budget()
    ts_sub, n_tiles = _choose_tiling(n_sub, ts_max)
    needs_mask = (n_tiles * ts_sub * 128) != S

    if pad_elems:
        # Only taken when S % 128 != 0 (pad < 128 elems/row) or the whole row
        # is < 1024 elems; never a large full-tensor round trip.
        # TODO(synk): a manual-DMA (memory_space=pl.ANY) tail path would remove
        # even this copy for lane-ragged S.
        p2 = jnp.pad(p2, ((0, 0), (0, pad_elems)))
        t2 = jnp.pad(t2, ((0, 0), (0, pad_elems)))
    p3 = p2.reshape(R, n_sub, 128)
    t3 = t2.reshape(R, n_sub, 128)

    kernel = functools.partial(
        _bce_tile_kernel, ts_sub=ts_sub, s_valid=S, n_sub_valid=n_sub_valid,
        lane_ragged=lane_ragged, needs_mask=needs_mask)

    # TODO(synk): for very small / odd R on v7x (2 TensorCores), an extra
    # "parallel" spatial-chunk axis would balance the cores; typical R = N*C
    # is even and >= 6, so it is omitted here.
    return pl.pallas_call(
        kernel,
        out_shape=jax.ShapeDtypeStruct((R, 8, 128), jnp.float32),
        grid_spec=pltpu.PrefetchScalarGridSpec(
            num_scalar_prefetch=0,
            grid=(R, n_tiles),                  # reduction axis last
            in_specs=[
                pl.BlockSpec((None, ts_sub, 128), lambda r, j: (r, j, 0)),
                pl.BlockSpec((None, ts_sub, 128), lambda r, j: (r, j, 0)),
            ],
            out_specs=pl.BlockSpec((None, 8, 128), lambda r, j: (r, 0, 0)),
        ),
        compiler_params=pltpu.CompilerParams(
            # Row axis "parallel" -> both v7x TensorCores; tiles are the reduction.
            dimension_semantics=("parallel", "arbitrary"),
            vmem_limit_bytes=vmem_limit,
        ),
    )(p3, t3)


def ce_loss_4mots(predict, target, num_classes=3, ignore_index=None):
    """Pallas-backed equivalent of CELoss4MOTS.forward (returns a scalar f32)."""
    assert predict.shape == target.shape, "predict & target shape do not match"
    N, C, D, H, W = predict.shape
    S = D * H * W
    R = N * C

    # No wrapper-side astype: stream the native storage dtype from HBM.
    partials = bce_partial_sums(predict.reshape(R, S), target.reshape(R, S), S)
    per_row = (partials.sum(axis=(1, 2)) * (1.0 / S)).reshape(N, C)

    first_vox = target[:, :, 0, 0, 0]                         # (N, C)
    valid = first_vox != -1

    per_class = []
    for i in range(num_classes):
        if i != ignore_index:
            v = valid[:, i]
            cnt = v.sum().astype(jnp.float32)
            s = jnp.where(v, per_row[:, i], 0.0).sum()
            per_class.append(s / cnt)       # NaN if cnt == 0 (matches torch 0/0)
    total = jnp.stack(per_class)

    # total_loss[total_loss == total_loss]: drop NaN entries, then average.
    keep = jnp.logical_not(jnp.isnan(total))
    n_keep = keep.sum().astype(jnp.float32)
    return jnp.where(keep, total, 0.0).sum() / n_keep


def _reference_loss(predict, target, num_classes=3, ignore_index=None):
    """Pure-JAX reference mirroring the PyTorch module, for verification."""
    x = predict.astype(jnp.float32)
    y = target.astype(jnp.float32)
    loss = jnp.maximum(x, 0.0) - x * y + jnp.log1p(jnp.exp(-jnp.abs(x)))
    per = loss.mean(axis=(2, 3, 4))                           # (N, C)
    valid = target[:, :, 0, 0, 0] != -1
    out = []
    for i in range(num_classes):
        if i != ignore_index:
            v = valid[:, i]
            out.append(jnp.where(v, per[:, i], 0.0).sum() / v.sum().astype(jnp.float32))
    total = jnp.stack(out)
    keep = jnp.logical_not(jnp.isnan(total))
    return jnp.where(keep, total, 0.0).sum() / keep.sum().astype(jnp.float32)


if __name__ == "__main__":
    key = jax.random.PRNGKey(0)
    kp, kt, kp2, kt2, kp3, kt3 = jax.random.split(key, 6)

    N, C = 2, 3
    fn = jax.jit(ce_loss_4mots)

    # Test 1: lane-aligned volume (S = 1024), one invalid (sample, class) pair.
    D, H, W = 4, 16, 16
    predict = jax.random.normal(kp, (N, C, D, H, W), dtype=jnp.float32)
    target = (jax.random.uniform(kt, (N, C, D, H, W)) > 0.5).astype(jnp.float32)
    target = target.at[1, 2].set(-1.0)
    out = jax.block_until_ready(fn(predict, target))
    ref = _reference_loss(predict, target)
    assert jnp.allclose(out, ref, atol=1e-5, rtol=1e-5), (out, ref)

    # Test 2: ragged sublane count (S = 1280 -> n_sub = 10), exercises the
    # partial-last-block + sublane-mask path (no wrapper padding at all).
    D2, H2, W2 = 4, 10, 32
    p2 = jax.random.normal(kp2, (N, C, D2, H2, W2), dtype=jnp.float32)
    t2 = (jax.random.uniform(kt2, (N, C, D2, H2, W2)) > 0.5).astype(jnp.float32)
    out2 = jax.block_until_ready(fn(p2, t2))
    ref2 = _reference_loss(p2, t2)
    assert jnp.allclose(out2, ref2, atol=1e-5, rtol=1e-5), (out2, ref2)

    # Test 3: S not a multiple of 128 (S = 360), exercises the lane-ragged
    # tail mask and the tiny-volume pad-to-8-sublanes path.
    D3, H3, W3 = 3, 10, 12
    p3 = jax.random.normal(kp3, (N, C, D3, H3, W3), dtype=jnp.float32)
    t3 = (jax.random.uniform(kt3, (N, C, D3, H3, W3)) > 0.5).astype(jnp.float32)
    out3 = jax.block_until_ready(fn(p3, t3))
    ref3 = _reference_loss(p3, t3)
    assert jnp.allclose(out3, ref3, atol=1e-5, rtol=1e-5), (out3, ref3)

    # TODO(synk): weight_function is dead code in the module's forward and is
    # intentionally not ported.
    print("KERNEL_OK")
</pallas_src>

<mosaic_0001>
module attributes {stable_mosaic.version = 11 : i64} {
  func.func @_bce_tile_kernel(%arg0: i32, %arg1: i32, %arg2: memref<1x8x128xf32, #tpu.memory_space<vmem>>, %arg3: memref<1x8x128xf32, #tpu.memory_space<vmem>>, %arg4: memref<1x8x128xf32, #tpu.memory_space<vmem>>) attributes {dimension_semantics = [#tpu.dimension_semantics<parallel>, #tpu.dimension_semantics<arbitrary>], iteration_bounds = array<i64: 6, 1>, scalar_prefetch = 0 : i64, scratch_operands = 0 : i64, tpu.core_type = #tpu.core_type<tc>, window_params = [{transform_indices = @transform_0, window_bounds = array<i64: 1, 8, 128>}, {transform_indices = @transform_1, window_bounds = array<i64: 1, 8, 128>}, {transform_indices = @transform_2, window_bounds = array<i64: 1, 8, 128>}]} {
    %c0_i32 = arith.constant 0 : i32
    %0 = arith.cmpi eq, %arg1, %c0_i32 : i32
    %1 = arith.extui %0 : i1 to i32
    %c0_i32_0 = arith.constant 0 : i32
    %2 = arith.cmpi ne, %1, %c0_i32_0 : i32
    scf.if %2 {
      %cst_13 = arith.constant 0.000000e+00 : f32
      %23 = vector.broadcast %cst_13 : f32 to vector<8x128xf32>
      %c0_14 = arith.constant 0 : index
      %c0_15 = arith.constant 0 : index
      %c0_16 = arith.constant 0 : index
      %24 = vector.load %arg4[%c0_14, %c0_15, %c0_16] : memref<1x8x128xf32, #tpu.memory_space<vmem>>, vector<1x8x128xf32>
      %25 = vector.shape_cast %24 : vector<1x8x128xf32> to vector<8x128xf32>
      %26 = vector.shape_cast %23 : vector<8x128xf32> to vector<1x8x128xf32>
      tpu.vector_store %arg4[%c0_14, %c0_15, %c0_16], %26 {strides = array<i32>} : memref<1x8x128xf32, #tpu.memory_space<vmem>>, vector<1x8x128xf32>,
    } else {
    }
    %c0 = arith.constant 0 : index
    %c0_1 = arith.constant 0 : index
    %c0_2 = arith.constant 0 : index
    %3 = vector.load %arg4[%c0, %c0_1, %c0_2] : memref<1x8x128xf32, #tpu.memory_space<vmem>>, vector<1x8x128xf32>
    %4 = vector.shape_cast %3 : vector<1x8x128xf32> to vector<8x128xf32>
    %c0_3 = arith.constant 0 : index
    %c0_4 = arith.constant 0 : index
    %c0_5 = arith.constant 0 : index
    %5 = vector.load %arg2[%c0_3, %c0_4, %c0_5] : memref<1x8x128xf32, #tpu.memory_space<vmem>>, vector<1x8x128xf32>
    %6 = vector.shape_cast %5 : vector<1x8x128xf32> to vector<8x128xf32>
    %c0_6 = arith.constant 0 : index
    %c0_7 = arith.constant 0 : index
    %c0_8 = arith.constant 0 : index
    %7 = vector.load %arg3[%c0_6, %c0_7, %c0_8] : memref<1x8x128xf32, #tpu.memory_space<vmem>>, vector<1x8x128xf32>
    %8 = vector.shape_cast %7 : vector<1x8x128xf32> to vector<8x128xf32>
    %cst = arith.constant 0.000000e+00 : f32
    %9 = vector.broadcast %cst : f32 to vector<8x128xf32>
    %10 = arith.maximumf %6, %9 : vector<8x128xf32>
    %11 = arith.mulf %6, %8 : vector<8x128xf32>
    %12 = arith.subf %10, %11 : vector<8x128xf32>
    %13 = math.absf %6 : vector<8x128xf32>
    %cst_9 = arith.constant 0.000000e+00 : f32
    %14 = vector.broadcast %cst_9 : f32 to vector<8x128xf32>
    %15 = arith.subf %14, %13 : vector<8x128xf32>
    %16 = math.exp %15 : vector<8x128xf32>
    %17 = math.log1p %16 : vector<8x128xf32>
    %18 = arith.addf %12, %17 : vector<8x128xf32>
    %19 = arith.addf %4, %18 : vector<8x128xf32>
    %c0_10 = arith.constant 0 : index
    %c0_11 = arith.constant 0 : index
    %c0_12 = arith.constant 0 : index
    %20 = vector.load %arg4[%c0_10, %c0_11, %c0_12] : memref<1x8x128xf32, #tpu.memory_space<vmem>>, vector<1x8x128xf32>
    %21 = vector.shape_cast %20 : vector<1x8x128xf32> to vector<8x128xf32>
    %22 = vector.shape_cast %19 : vector<8x128xf32> to vector<1x8x128xf32>
    tpu.vector_store %arg4[%c0_10, %c0_11, %c0_12], %22 {strides = array<i32>} : memref<1x8x128xf32, #tpu.memory_space<vmem>>, vector<1x8x128xf32>,
    return
  }
  func.func @transform_0(%arg0: i32, %arg1: i32) -> (i32, i32, i32) {
    %c0_i32 = arith.constant 0 : i32
    %c0_i32_0 = arith.constant 0 : i32
    return %arg0, %arg1, %c0_i32 : i32, i32, i32
  }
  func.func @transform_1(%arg0: i32, %arg1: i32) -> (i32, i32, i32) {
    %c0_i32 = arith.constant 0 : i32
    %c0_i32_0 = arith.constant 0 : i32
    return %arg0, %arg1, %c0_i32 : i32, i32, i32
  }
  func.func @transform_2(%arg0: i32, %arg1: i32) -> (i32, i32, i32) {
    %c0_i32 = arith.constant 0 : i32
    %c0_i32_0 = arith.constant 0 : i32
    %c0_i32_1 = arith.constant 0 : i32
    return %arg0, %c0_i32, %c0_i32_0 : i32, i32, i32
  }
}

</mosaic_0001>

<llo_original>
// kernel: ce_loss_4mots.1
$region0: #{ce_loss_4mots.1}
  #allocation0 [shape = 'u32[]', space=smem, size = 0x4, offset = 0x4, fixed_abs, tag = 'smem constant byte address 0x4 - core index']
  #allocation1 [shape = 'u32[144,128]{1,0:T(1,128)}', space=vmem, size = 0x12000, scoped, tag = 'internal scratch']
  %s0 = inlined_call_operand.vmem [shape: f32[6,8,128], index: 0, kind: input, shape index: {}]
  %s1 = inlined_call_operand.vmem [shape: f32[6,8,128], index: 1, kind: input, shape index: {}]
  %s2 = inlined_call_operand.vmem [shape: f32[6,8,128], index: 2, kind: output, shape index: {}]
  %s3 = sld [smem:[#allocation0]]
  $region45: #{ce_loss_4mots.1} parent=0
    _
  %s5 = ssub.s32 1, %s3
  %s6 = scalar_select 0, %s5, %s3
  loop: start=0, step=1, limit=8
  $region2: #{ce_loss_4mots.1} parent=0 // loop_pre_header
    _
  $region3: #{ce_loss_4mots.1} parent=0 // loop_header
    %s8 = sphi 0, %s12
    %p9 = scmp.ge.s32.totalorder %s8, 8
    %s15 = sphi 0, %s27
    %s16 = sphi 0, %s23
    %s17 = sphi 0, %s15
    %s18 = sphi 0, %s16
    %s19 = sphi 0, %s17
    %s20 = sphi 0, %s18
    %s32 = sphi 0, %s34
    %s35 = sphi 0, %s32
    %s36 = sphi 0, %s35
    %s52 = sphi 0, %s36
    %s60 = sphi 0, %s62
    %s63 = sphi 0, %s60
    %s64 = sphi 0, %s63
    %s80 = sphi 0, %s64
    %s86 = sphi 0, %s88
    %s89 = sphi 0, %s86
    %s90 = sphi 0, %s89
    %s106 = sphi 0, %s90
  $region4: #{ce_loss_4mots.1} parent=0 // loop_header_branch
    %11 = sbr.rel (%p9) target = $region8
  $region5: #{ce_loss_4mots.1} parent=0 // loop_body
    %s13 = ssub.s32 %s8, 1
    %s14 = ssub.s32 %s8, 2
    %s21 = sadd.s32 1, %s16
    %p22 = scmp.ge.s32.totalorder %s21, 1
    %s23 = scalar_select %p22, 0, %s21
    %s24 = sadd.s32 1, %s15
    %s25 = scalar_select %p22, %s24, %s15
    %p26 = scmp.ge.s32.totalorder %s25, 6
    %s27 = scalar_select %p26, 0, %s25
    %s28 = ssub.s32 %s15, %s27
    %s29 = ssub.s32 %s16, %s23
    %s30 = sor.u32 %s28, %s29
    %p31 = scmp.eq.s32.totalorder %s30, 0
    %s33 = sadd.s32 %s32, 1
    %s34 = scalar_select %p31, %s32, %s33
    %p37 = pneg %p31
    %p38 = scmp.eq.s32.totalorder %s8, 5
    %p39 = por %p37, %p38
    %p40 = scmp.ne.s32.totalorder %s32, %s35
    %p41 = scmp.eq.s32.totalorder %s8, 0
    %p42 = por %p40, %p41
    %p43 = scmp.ne.s32.totalorder %s32, %s35
    %p44 = scmp.eq.s32.totalorder %s13, 5
    %p45 = por %p43, %p44
    %p46 = scmp.ne.s32.totalorder %s35, %s36
    %p47 = scmp.eq.s32.totalorder %s13, 0
    %p48 = por %p46, %p47
    %p49 = scmp.ne.s32.totalorder %s35, %s36
    %p50 = scmp.eq.s32.totalorder %s14, 5
    %p51 = por %p49, %p50
    %p53 = scmp.ne.s32.totalorder %s36, %s52
    %p54 = scmp.eq.s32.totalorder %s14, 0
    %p55 = por %p53, %p54
    %s56 = ssub.s32 %s15, %s27
    %s57 = ssub.s32 %s16, %s23
    %s58 = sor.u32 %s56, %s57
    %p59 = scmp.eq.s32.totalorder %s58, 0
    %s61 = sadd.s32 %s60, 1
    %s62 = scalar_select %p59, %s60, %s61
    %p65 = pneg %p59
    %p66 = scmp.eq.s32.totalorder %s8, 5
    %p67 = por %p65, %p66
    %p68 = scmp.ne.s32.totalorder %s60, %s63
    %p69 = scmp.eq.s32.totalorder %s8, 0
    %p70 = por %p68, %p69
    %p71 = scmp.ne.s32.totalorder %s60, %s63
    %p72 = scmp.eq.s32.totalorder %s13, 5
    %p73 = por %p71, %p72
    %p74 = scmp.ne.s32.totalorder %s63, %s64
    %p75 = scmp.eq.s32.totalorder %s13, 0
    %p76 = por %p74, %p75
    %p77 = scmp.ne.s32.totalorder %s63, %s64
    %p78 = scmp.eq.s32.totalorder %s14, 5
    %p79 = por %p77, %p78
    %p81 = scmp.ne.s32.totalorder %s64, %s80
    %p82 = scmp.eq.s32.totalorder %s14, 0
    %p83 = por %p81, %p82
    %s84 = ssub.s32 %s15, %s27
    %p85 = scmp.eq.s32.totalorder %s84, 0
    %s87 = sadd.s32 %s86, 1
    %s88 = scalar_select %p85, %s86, %s87
    %p91 = pneg %p85
    %p92 = scmp.eq.s32.totalorder %s8, 5
    %p93 = por %p91, %p92
    %p94 = scmp.ne.s32.totalorder %s86, %s89
    %p95 = scmp.eq.s32.totalorder %s8, 0
    %p96 = por %p94, %p95
    %p97 = scmp.ne.s32.totalorder %s86, %s89
    %p98 = scmp.eq.s32.totalorder %s13, 5
    %p99 = por %p97, %p98
    %p100 = scmp.ne.s32.totalorder %s89, %s90
    %p101 = scmp.eq.s32.totalorder %s13, 0
    %p102 = por %p100, %p101
    %p103 = scmp.ne.s32.totalorder %s89, %s90
    %p104 = scmp.eq.s32.totalorder %s14, 5
    %p105 = por %p103, %p104
    %p107 = scmp.ne.s32.totalorder %s90, %s106
    %p108 = scmp.eq.s32.totalorder %s14, 0
    %p109 = por %p107, %p108
    %p110 = scmp.le.s32.totalorder 1, %s8
    %p111 = scmp.lt.s32.totalorder %s8, 7
    %p112 = pnand %p110, %p111
    %p113 = pneg %p112
    // Predicated region
    $region9: #{ce_loss_4mots.1} parent=5 // pred_check
      _
    $region10: #{ce_loss_4mots.1} parent=5 // pred_check_branch
      %115 = sbr.rel (%p112) target = $region12
    $region11: #{ce_loss_4mots.1} parent=5 // pred_region
      %s116 = ssub.s32 %s8, 1
    $region12: #{ce_loss_4mots.1} parent=5 // pred_fallthru
      _
    %p117 = scmp.lt.s32.totalorder %s8, 6
    // Predicated region
    $region13: #{ce_loss_4mots.1} parent=5 // pred_check
      %p118 = pneg %p117
    $region14: #{ce_loss_4mots.1} parent=5 // pred_check_branch
      %120 = sbr.rel (%p118) target = $region16
    $region15: #{ce_loss_4mots.1} parent=5 // pred_region
      // Predicated region
      $region17: #{ce_loss_4mots.1} parent=15 // pred_check
        %p121 = pneg %p42
      $region18: #{ce_loss_4mots.1} parent=15 // pred_check_branch
        %123 = sbr.rel (%p121) target = $region20
      $region19: #{ce_loss_4mots.1} parent=15 // pred_region
        %p124 = scmp.lt.s32.totalorder %s15, 5
        %s125 = scalar_select %p124, %s15, 5
        %p126 = scmp.lt.s32.totalorder %s16, 0
        %s127 = scalar_select %p126, %s16, 0
        %s128 = sadd.s32 %s127, %s125
        %s129 = smul.addr %s128, 8
        %s130 = scalar_lea.vmem %s0, %s129
      $region20: #{ce_loss_4mots.1} parent=15 // pred_fallthru
        _
      // Predicated region
      $region21: #{ce_loss_4mots.1} parent=15 // pred_check
        %p131 = pneg %p70
      $region22: #{ce_loss_4mots.1} parent=15 // pred_check_branch
        %133 = sbr.rel (%p131) target = $region24
      $region23: #{ce_loss_4mots.1} parent=15 // pred_region
        %p134 = scmp.lt.s32.totalorder %s15, 5
        %s135 = scalar_select %p134, %s15, 5
        %p136 = scmp.lt.s32.totalorder %s16, 0
        %s137 = scalar_select %p136, %s16, 0
        %s138 = sadd.s32 %s137, %s135
        %s139 = smul.addr %s138, 8
        %s140 = scalar_lea.vmem %s1, %s139
      $region24: #{ce_loss_4mots.1} parent=15 // pred_fallthru
        _
    $region16: #{ce_loss_4mots.1} parent=5 // pred_fallthru
      _
    %p141 = scmp.le.s32.totalorder 1, %s8
    %p142 = scmp.lt.s32.totalorder %s8, 7
    %p143 = pnand %p141, %p142
    %p144 = pneg %p143
    // Predicated region
    $region25: #{ce_loss_4mots.1} parent=5 // pred_check
      _
    $region26: #{ce_loss_4mots.1} parent=5 // pred_check_branch
      %146 = sbr.rel (%p143) target = $region28
    $region27: #{ce_loss_4mots.1} parent=5 // pred_region
      %s147 = ssub.s32 %s8, 1
      %p148 = scmp.lt.s32.totalorder %s17, 5
      %s149 = scalar_select %p148, %s17, 5
      %p150 = scmp.lt.s32.totalorder %s18, 0
      %s151 = scalar_select %p150, %s18, 0
      %s152 = sadd.s32 %s151, %s149
      %s153 = smul.addr %s152, 8
      %s154 = scalar_lea.vmem %s0, %s153
      %p155 = pneg %p48
      %p156 = pneg %p45
      %p157 = scmp.lt.s32.totalorder %s17, 5
      %s158 = scalar_select %p157, %s17, 5
      %p159 = scmp.lt.s32.totalorder %s18, 0
      %s160 = scalar_select %p159, %s18, 0
      %s161 = sadd.s32 %s160, %s158
      %s162 = smul.addr %s161, 8
      %s163 = scalar_lea.vmem %s1, %s162
      %p164 = pneg %p76
      %p165 = pneg %p73
      %p166 = pneg %p102
      %p167 = pneg %p99
      %p168 = scmp.lt.s32.totalorder %s17, 5
      %s169 = scalar_select %p168, %s17, 5
      %s170 = smul.addr %s169, 8
      %s171 = scalar_lea.vmem %s2, %s170
      %p172 = scmp.lt.s32.totalorder %s17, 5
      %s173 = scalar_select %p172, %s17, 5
      %p174 = scmp.lt.s32.totalorder %s18, 0
      %s175 = scalar_select %p174, %s18, 0
      %s176 = sadd.s32 %s175, %s173
      %s177 = smul.addr %s176, 8
      %s178 = scalar_lea.vmem %s0, %s177
      %p179 = scmp.lt.s32.totalorder %s17, 5
      %s180 = scalar_select %p179, %s17, 5
      %p181 = scmp.lt.s32.totalorder %s18, 0
      %s182 = scalar_select %p181, %s18, 0
      %s183 = sadd.s32 %s182, %s180
      %s184 = smul.addr %s183, 8
      %s185 = scalar_lea.vmem %s1, %s184
      %p186 = scmp.lt.s32.totalorder %s17, 5
      %s187 = scalar_select %p186, %s17, 5
      %s188 = smul.addr %s187, 8
      %s189 = scalar_lea.vmem %s2, %s188
      %p190 = scmp.eq.s32.totalorder %s18, 0
      // Predicated region
      $region29: #{ce_loss_4mots.1} parent=27 // pred_check
        %p191 = pneg %p190
      $region30: #{ce_loss_4mots.1} parent=27 // pred_check_branch
        %193 = sbr.rel (%p191) target = $region32
      $region31: #{ce_loss_4mots.1} parent=27 // pred_region
        %194 = vst [vmem:[%s189] sm:$0xff] 0.0
      $region32: #{ce_loss_4mots.1} parent=27 // pred_fallthru
        _
      %v195 = vld [vmem:[%s189] sm:$0xff]
      %v196 = vld [vmem:[%s178] sm:$0xff]
      %v197 = vld [vmem:[%s185] sm:$0xff]
      %v198 = vmax.f32 %v196, 0.0
      %v199 = vmul.f32 %v196, %v197
      %v200 = vsub.f32 %v198, %v199
      %v201 = vand.u32 2147483647, %v196
      %v202 = vsub.f32 0.0, %v201
      %v203 = vmul.f32 %v202, 1.442695
      %v204 = vpow.pop %v203
      %v205 = vadd.f32 %v204, 1.0
      %v206 = vlog2.pop %v205
      %v207 = vmul.f32 %v206, 0.6931472
      %v208 = vmul.f32 -0.5, %v204
      %v209 = vadd.f32 %v208, 1.0
      %v210 = vmul.f32 %v209, %v204
      %v211 = vand.u32 2147483647, %v204
      %vm212 = vcmp.lt.f32.partialorder %v211, 0.0004427343
      %v213 = vsel %vm212, %v210, %v207
      %v214 = vadd.f32 %v200, %v213
      %v215 = vadd.f32 %v195, %v214
      %216 = vst [vmem:[%s189] sm:$0xff] %v215
      %p217 = scmp.lt.s32.totalorder %s17, 5
      %s218 = scalar_select %p217, %s17, 5
      %s219 = smul.addr %s218, 8
      %s220 = scalar_lea.vmem %s2, %s219
      // Predicated region
      $region33: #{ce_loss_4mots.1} parent=27 // pred_check
        %p221 = pneg %p99
      $region34: #{ce_loss_4mots.1} parent=27 // pred_check_branch
        %223 = sbr.rel (%p221) target = $region36
      $region35: #{ce_loss_4mots.1} parent=27 // pred_region
        _
      $region36: #{ce_loss_4mots.1} parent=27 // pred_fallthru
        _
    $region28: #{ce_loss_4mots.1} parent=5 // pred_fallthru
      _
    %p224 = scmp.le.s32.totalorder 2, %s8
    // Predicated region
    $region37: #{ce_loss_4mots.1} parent=5 // pred_check
      %p225 = pneg %p224
    $region38: #{ce_loss_4mots.1} parent=5 // pred_check_branch
      %227 = sbr.rel (%p225) target = $region40
    $region39: #{ce_loss_4mots.1} parent=5 // pred_region
      %s228 = ssub.s32 %s8, 2
      // Predicated region
      $region41: #{ce_loss_4mots.1} parent=39 // pred_check
        %p229 = pneg %p105
      $region42: #{ce_loss_4mots.1} parent=39 // pred_check_branch
        %231 = sbr.rel (%p229) target = $region44
      $region43: #{ce_loss_4mots.1} parent=39 // pred_region
        %p232 = scmp.lt.s32.totalorder %s19, 5
        %s233 = scalar_select %p232, %s19, 5
        %s234 = smul.addr %s233, 8
        %s235 = scalar_lea.vmem %s2, %s234
      $region44: #{ce_loss_4mots.1} parent=39 // pred_fallthru
        _
    $region40: #{ce_loss_4mots.1} parent=5 // pred_fallthru
      _
  $region6: #{ce_loss_4mots.1} parent=0 // loop_footer
    %s12 = sadd.s32 1, %s8
  $region7: #{ce_loss_4mots.1} parent=0 // loop_footer_branch
    %7 = sbr.rel target = $region3
  $region8: #{ce_loss_4mots.1} parent=0 // loop_exit
    _

</llo_original>
